<compile_context>
chip_gen: v6e
topology: v6e:2x2x1
jax: 0.10.0
libtpu: 0.0.40
codegen_flags: <defaults>
</compile_context>

<pallas_src>
import jax
import jax.numpy as jnp
from jax.experimental import pallas as pl
from jax.experimental.pallas import tpu as pltpu

LANE = 128              # TPU lane width; hid_dim (64) is zero-padded up to this.
_SUBLANE = 8
_MIN_TILE_B = 1024      # below this, splitting the grid for megacore isn't worth it
_DEFAULT_TILE_B = 8192  # 4 MiB f32 x tile per buffer (review target: 4-8 MiB)
_VMEM_LIMIT_BYTES = 48 * 1024 * 1024  # headroom under v7x's 64 MiB physical VMEM


def mlp_kernel(x_ref, w1_ref, b1_ref, w2_ref, b2_ref, o_ref):
    # Layer 1 on the MXU: (TILE_B, 128) @ (128, 128), f32 accumulation.
    h = jnp.dot(x_ref[...], w1_ref[...], preferred_element_type=jnp.float32)
    h = jnp.maximum(h + b1_ref[...], 0.0)            # bias + ReLU on the VPU
    # Dropout(p=0.5): eval-mode forward == identity.
    # TODO(synk): training-mode dropout (pltpu.prng_seed + prng_random_bits
    #             mask with 1/(1-p) scaling) if train() parity is ever needed.
    # Layer 2 (64 -> 1) as VPU multiply + lane reduction; b2 is an SMEM scalar.
    y = jnp.sum(h * w2_ref[...], axis=-1, keepdims=True) + b2_ref[0, 0]
    # NOTE: the (TILE_B, 1) store is lane-sparse; per the perf review the
    # masked stores hide under the dominant x DMA, so it is kept.  If a bundle
    # dump ever shows vst.msk on the critical path, switch to a lane-dense
    # (1, TILE_B) out block and reshape in the wrapper.
    o_ref[...] = y.astype(o_ref.dtype)


def mlp_forward(x, w1, b1, w2, b2, *, tile_b=_DEFAULT_TILE_B):
    """Eval-mode MLP forward.

    Params are (in, out) layout (PyTorch (out, in) weights must be transposed
    by the caller, as done in init_params).

    Reduced precision: do NOT cast x here -- a wrapper-side astype is a
    separate XLA pass that re-reads/re-writes x in HBM and costs more than it
    saves.  Have the *producer* emit x in bf16 (or fp8 on v7x) and this kernel
    will run layer 1 in that dtype with f32 accumulation.
    """
    B, in_dim = x.shape
    hid_dim = w1.shape[1]
    out_dim = w2.shape[1]
    out_dtype = x.dtype

    # Shape contract (guards against PyTorch-native (out,) bias layouts).
    assert w1.shape == (in_dim, hid_dim), w1.shape
    assert b1.shape == (1, hid_dim), b1.shape
    assert w2.shape == (hid_dim, out_dim), w2.shape
    assert b2.shape == (1, out_dim), b2.shape
    assert out_dim == 1, "kernel specialises the out_dim == 1 reduction form"

    # Match the resident W1 to x's dtype so the MXU runs in the stream dtype.
    # (64 KiB one-time cast -- not the x stream.)
    if w1.dtype != x.dtype:
        w1 = w1.astype(x.dtype)

    # Pad hidden dim to a full lane tile (zero columns are exact no-ops: they
    # stay 0 through bias/ReLU and contribute 0 to the layer-2 reduction).
    pad = LANE - hid_dim if hid_dim < LANE else 0
    if pad:
        w1 = jnp.pad(w1, ((0, 0), (0, pad)))
        b1 = jnp.pad(b1, ((0, 0), (0, pad)))
        w2 = jnp.pad(w2, ((0, pad), (0, 0)))
    hid_p = hid_dim + pad
    w2_row = w2.reshape(1, hid_p).astype(jnp.float32)  # lane-aligned row
    b1 = b1.astype(jnp.float32)
    b2 = b2.astype(jnp.float32)

    # ---- Batch tiling ------------------------------------------------------
    # VMEM budget per step at tile_b=8192 (f32): x 4 MiB x 2 buffers
    # + out block (lane-padded to 128) 4 MiB x 2 buffers + h intermediate
    # ~4-8 MiB + resident params < 0.2 MiB  =>  ~20-24 MiB, covered by the
    # explicit 48 MiB limit (under v7x's 64 MiB physical, well under v5e/v6e's
    # 128 MiB physical).
    tile_b = min(tile_b, B)
    # v7x megacore: keep >= 2 grid steps on the "parallel" batch axis so both
    # TensorCores get work whenever B is large enough for the tiles to still
    # amortize the per-step overhead.
    if B >= 2 * _MIN_TILE_B and pl.cdiv(B, tile_b) < 2:
        half = pl.cdiv(B, 2)
        tile_b = ((half + _SUBLANE - 1) // _SUBLANE) * _SUBLANE
    grid = (pl.cdiv(B, tile_b),)

    # Advisory cost estimate: tell XLA's scheduler this op is bandwidth-bound
    # (dominated by the x stream).
    x_itemsize = jnp.dtype(x.dtype).itemsize
    cost = pl.CostEstimate(
        flops=2 * B * in_dim * hid_p + 3 * B * hid_p,
        transcendentals=0,
        bytes_accessed=(B * in_dim * x_itemsize                  # x stream
                        + in_dim * hid_p * x_itemsize            # W1
                        + 2 * hid_p * 4 + 4                      # b1, w2 row, b2
                        + B * out_dim * jnp.dtype(out_dtype).itemsize),
    )

    return pl.pallas_call(
        mlp_kernel,
        out_shape=jax.ShapeDtypeStruct((B, out_dim), out_dtype),
        grid=grid,
        in_specs=[
            pl.BlockSpec((tile_b, in_dim), lambda i: (i, 0)),   # x: streamed
            pl.BlockSpec((in_dim, hid_p), lambda i: (0, 0)),    # W1: resident
            pl.BlockSpec((1, hid_p), lambda i: (0, 0)),         # b1: resident
            pl.BlockSpec((1, hid_p), lambda i: (0, 0)),         # w2 row: resident
            pl.BlockSpec(memory_space=pltpu.MemorySpace.SMEM),  # b2: SMEM scalar
        ],
        out_specs=pl.BlockSpec((tile_b, out_dim), lambda i: (i, 0)),
        compiler_params=pltpu.CompilerParams(
            dimension_semantics=("parallel",),
            vmem_limit_bytes=_VMEM_LIMIT_BYTES),
        cost_estimate=cost,
    )(x, w1, b1, w2_row, b2)


def init_params(key, in_dim=128, hid_dim=64, out_dim=1):
    # PyTorch nn.Linear default init: U(-1/sqrt(fan_in), 1/sqrt(fan_in)),
    # stored here already transposed to (in, out).
    k1, k2, k3, k4 = jax.random.split(key, 4)
    bound1 = 1.0 / jnp.sqrt(in_dim)
    bound2 = 1.0 / jnp.sqrt(hid_dim)
    w1 = jax.random.uniform(k1, (in_dim, hid_dim), jnp.float32, -bound1, bound1)
    b1 = jax.random.uniform(k2, (1, hid_dim), jnp.float32, -bound1, bound1)
    w2 = jax.random.uniform(k3, (hid_dim, out_dim), jnp.float32, -bound2, bound2)
    b2 = jax.random.uniform(k4, (1, out_dim), jnp.float32, -bound2, bound2)
    return w1, b1, w2, b2


if __name__ == "__main__":
    key = jax.random.PRNGKey(0)
    kx, kp = jax.random.split(key)

    B, IN, HID, OUT = 8, 128, 64, 1
    x = jax.random.normal(kx, (B, IN), jnp.float32)
    w1, b1, w2, b2 = init_params(kp, IN, HID, OUT)

    # Pure-JAX reference (eval-mode forward).
    ref = jnp.maximum(x @ w1 + b1, 0.0) @ w2 + b2

    # f32 path: exact-ish match against reference.
    out = jax.block_until_ready(mlp_forward(x, w1, b1, w2, b2))
    assert out.shape == (B, OUT)
    assert jnp.allclose(out, ref, atol=1e-5, rtol=1e-5)

    # bf16 x emitted *at the producer* (the supported reduced-precision
    # pattern; no wrapper-side cast inside mlp_forward). Layer 1 runs bf16
    # with f32 accumulation.
    x_bf16 = x.astype(jnp.bfloat16)  # stands in for a bf16-emitting producer
    ref_bf16 = jnp.maximum(x_bf16.astype(jnp.float32) @ w1 + b1, 0.0) @ w2 + b2
    out_bf16 = jax.block_until_ready(mlp_forward(x_bf16, w1, b1, w2, b2))
    assert out_bf16.shape == (B, OUT)
    assert jnp.allclose(out_bf16.astype(jnp.float32), ref_bf16,
                        atol=5e-2, rtol=5e-2)

    # Multi-step grid + partial final tile (B % tile_b != 0): locks in masked
    # block handling for both the x read and the (tile_b, 1) output write.
    B2 = 20
    x2 = jax.random.normal(kx, (B2, IN), jnp.float32)
    ref2 = jnp.maximum(x2 @ w1 + b1, 0.0) @ w2 + b2
    out2 = jax.block_until_ready(mlp_forward(x2, w1, b1, w2, b2, tile_b=8))
    assert out2.shape == (B2, OUT)
    assert jnp.allclose(out2, ref2, atol=1e-5, rtol=1e-5)

    print("KERNEL_OK")
</pallas_src>

<mosaic_0001>
module attributes {stable_mosaic.version = 11 : i64} {
  func.func @mlp_kernel(%arg0: i32, %arg1: memref<8x128xf32, #tpu.memory_space<vmem>>, %arg2: memref<128x128xf32, #tpu.memory_space<vmem>>, %arg3: memref<1x128xf32, #tpu.memory_space<vmem>>, %arg4: memref<1x128xf32, #tpu.memory_space<vmem>>, %arg5: memref<1x1xf32, #tpu.memory_space<smem>>, %arg6: memref<8x1xf32, #tpu.memory_space<vmem>>) attributes {dimension_semantics = [#tpu.dimension_semantics<parallel>], iteration_bounds = array<i64: 1>, scalar_prefetch = 0 : i64, scratch_operands = 0 : i64, tpu.core_type = #tpu.core_type<tc>, window_params = [{transform_indices = @transform_0, window_bounds = array<i64: 8, 128>}, {pipeline_mode = #tpu.pipeline_mode<synchronous>, transform_indices = @transform_1, window_bounds = array<i64: 128, 128>}, {pipeline_mode = #tpu.pipeline_mode<synchronous>, transform_indices = @transform_2, window_bounds = array<i64: 1, 128>}, {pipeline_mode = #tpu.pipeline_mode<synchronous>, transform_indices = @transform_3, window_bounds = array<i64: 1, 128>}, {transform_indices = @transform_4, window_bounds = array<i64: 1, 1>}, {transform_indices = @transform_5, window_bounds = array<i64: 8, 1>}]} {
    %c0 = arith.constant 0 : index
    %c0_0 = arith.constant 0 : index
    %0 = vector.load %arg1[%c0, %c0_0] : memref<8x128xf32, #tpu.memory_space<vmem>>, vector<8x128xf32>
    %c0_1 = arith.constant 0 : index
    %c0_2 = arith.constant 0 : index
    %1 = vector.load %arg2[%c0_1, %c0_2] : memref<128x128xf32, #tpu.memory_space<vmem>>, vector<128x128xf32>
    %cst = arith.constant dense<0.000000e+00> : vector<8x128xf32>
    %2 = tpu.matmul %0, %1, %cst {dimension_numbers = #tpu.dot_dimension_numbers<[1], [0], [0], [1], [0, 0, 1, 1], [], []>} : vector<8x128xf32>, vector<128x128xf32>, vector<8x128xf32> -> vector<8x128xf32>
    %c0_3 = arith.constant 0 : index
    %c0_4 = arith.constant 0 : index
    %3 = vector.load %arg3[%c0_3, %c0_4] : memref<1x128xf32, #tpu.memory_space<vmem>>, vector<1x128xf32>
    %4 = vector.broadcast %3 : vector<1x128xf32> to vector<8x128xf32>
    %5 = arith.addf %2, %4 : vector<8x128xf32>
    %cst_5 = arith.constant 0.000000e+00 : f32
    %6 = vector.broadcast %cst_5 : f32 to vector<8x128xf32>
    %7 = arith.maximumf %5, %6 : vector<8x128xf32>
    %c0_6 = arith.constant 0 : index
    %c0_7 = arith.constant 0 : index
    %8 = vector.load %arg4[%c0_6, %c0_7] : memref<1x128xf32, #tpu.memory_space<vmem>>, vector<1x128xf32>
    %9 = vector.broadcast %8 : vector<1x128xf32> to vector<8x128xf32>
    %10 = arith.mulf %7, %9 : vector<8x128xf32>
    %cst_8 = arith.constant dense<0.000000e+00> : vector<8xf32>
    %11 = vector.multi_reduction <add>, %10, %cst_8 [1] : vector<8x128xf32> to vector<8xf32>
    %12 = vector.shape_cast %11 : vector<8xf32> to vector<8x1xf32>
    %c0_9 = arith.constant 0 : index
    %c0_10 = arith.constant 0 : index
    %13 = memref.load %arg5[%c0_9, %c0_10] : memref<1x1xf32, #tpu.memory_space<smem>>
    %14 = vector.broadcast %13 : f32 to vector<8x1xf32>
    %15 = arith.addf %12, %14 : vector<8x1xf32>
    %c0_11 = arith.constant 0 : index
    %c0_12 = arith.constant 0 : index
    %16 = vector.load %arg6[%c0_11, %c0_12] : memref<8x1xf32, #tpu.memory_space<vmem>>, vector<8x1xf32>
    tpu.vector_store %arg6[%c0_11, %c0_12], %15 {strides = array<i32>} : memref<8x1xf32, #tpu.memory_space<vmem>>, vector<8x1xf32>,
    return
  }
  func.func @transform_0(%arg0: i32) -> (i32, i32) {
    %c0_i32 = arith.constant 0 : i32
    %c0_i32_0 = arith.constant 0 : i32
    return %arg0, %c0_i32 : i32, i32
  }
  func.func @transform_1(%arg0: i32) -> (i32, i32) {
    %c0_i32 = arith.constant 0 : i32
    %c0_i32_0 = arith.constant 0 : i32
    %c0_i32_1 = arith.constant 0 : i32
    return %c0_i32, %c0_i32_0 : i32, i32
  }
  func.func @transform_2(%arg0: i32) -> (i32, i32) {
    %c0_i32 = arith.constant 0 : i32
    %c0_i32_0 = arith.constant 0 : i32
    %c0_i32_1 = arith.constant 0 : i32
    return %c0_i32, %c0_i32_0 : i32, i32
  }
  func.func @transform_3(%arg0: i32) -> (i32, i32) {
    %c0_i32 = arith.constant 0 : i32
    %c0_i32_0 = arith.constant 0 : i32
    %c0_i32_1 = arith.constant 0 : i32
    return %c0_i32, %c0_i32_0 : i32, i32
  }
  func.func @transform_4(%arg0: i32) -> (i32, i32) {
    %c0_i32 = arith.constant 0 : i32
    %c0_i32_0 = arith.constant 0 : i32
    %c0_i32_1 = arith.constant 0 : i32
    return %c0_i32, %c0_i32_0 : i32, i32
  }
  func.func @transform_5(%arg0: i32) -> (i32, i32) {
    %c0_i32 = arith.constant 0 : i32
    %c0_i32_0 = arith.constant 0 : i32
    return %arg0, %c0_i32 : i32, i32
  }
}

</mosaic_0001>

<llo_original>
// kernel: tpu_custom_call.1
$region0: #{tpu_custom_call.1}
  #allocation0 [shape = 'u32[]', space=smem, size = 0x4, offset = 0x4, fixed_abs, tag = 'smem constant byte address 0x4 - core index']
  #allocation1 [shape = 'u32[144,128]{1,0:T(1,128)}', space=vmem, size = 0x12000, scoped, tag = 'internal scratch']
  #allocation2 [shape = 'f32[1,1]{1,0:T(1,128)S(6)}', space=smem, size = 0x200, scoped, tag = 'scoped memory for tpu_custom_call.1']
  %s0 = inlined_call_operand.hbm [shape: f32[8,128], index: 0, kind: input, shape index: {}]
  %s1 = inlined_call_operand.hbm [shape: f32[128,128], index: 1, kind: input, shape index: {}]
  %s2 = inlined_call_operand.vmem [shape: f32[1,128], index: 2, kind: input, shape index: {}]
  %s3 = inlined_call_operand.vmem [shape: f32[1,128], index: 3, kind: input, shape index: {}]
  %s4 = inlined_call_operand.<no memory space> [shape: f32[1,1], index: 4, kind: input, shape index: {}]
  %s5 = inlined_call_operand.vmem [shape: f32[8,1], index: 5, kind: output, shape index: {}]
  %s6 = sld [smem:[#allocation0]]
  $region38: #{tpu_custom_call.1} parent=0
    _
  %s8 = ssub.s32 1, %s6
  %s9 = scalar_select 0, %s8, %s6
  %10 = sst [smem:[#allocation2]] %s4
  $region1: #{tpu_custom_call.1} parent=0
    #allocation3 [shape = 'u8[4096]{0}', space=vmem, size = 0x1000, scoped, tag = 'input window, operand 0, single buffered']
    #allocation4 [shape = 's32[1]{0}', space=sflag, size = 0x4, scoped, tag = 'scoped memory for tpu_custom_call.1']
    #allocation5 [shape = 'u8[65536]{0}', space=vmem, size = 0x10000, scoped, tag = 'input window, operand 1, single buffered']
    #allocation6 [shape = 's32[1]{0}', space=sflag, size = 0x4, scoped, tag = 'scoped memory for tpu_custom_call.1']
    %11 = vsyncpa [#allocation4], 0
    %12 = vsyncpa [#allocation6], 0
    // Predicated region
    $region2: #{tpu_custom_call.1} parent=1 // pred_check
      _
    $region3: #{tpu_custom_call.1} parent=1 // pred_check_branch
      %14 = sbr.rel (0) target = $region5
    $region4: #{tpu_custom_call.1} parent=1 // pred_region
      %s16 = ssub.s32 128, 128
      %17 = vsyncadd [#allocation4], %s16
      %s19 = sshll.u32 [#allocation3], 4
      %s20 = int_to_ptr.vmem [resolvable:$true] %s19
      %22 = dma.hbm_to_vmem [thread:$0]  %s0, 128, %s20, [#allocation4]
    $region5: #{tpu_custom_call.1} parent=1 // pred_fallthru
      _
    // Predicated region
    $region6: #{tpu_custom_call.1} parent=1 // pred_check
      _
    $region7: #{tpu_custom_call.1} parent=1 // pred_check_branch
      %24 = sbr.rel (0) target = $region9
    $region8: #{tpu_custom_call.1} parent=1 // pred_region
      %s26 = ssub.s32 2048, 2048
      %27 = vsyncadd [#allocation6], %s26
      %s28 = sshll.u32 [#allocation5], 4
      %s29 = int_to_ptr.vmem [resolvable:$true] %s28
      %34 = dma.hbm_to_vmem [thread:$0]  %s1, 2048, %s29, [#allocation6], 128, 128, 8
    $region9: #{tpu_custom_call.1} parent=1 // pred_fallthru
      _
    // Predicated region
    $region10: #{tpu_custom_call.1} parent=1 // pred_check
      _
    $region11: #{tpu_custom_call.1} parent=1 // pred_check_branch
      %36 = sbr.rel (0) target = $region13
    $region12: #{tpu_custom_call.1} parent=1 // pred_region
      _
    $region13: #{tpu_custom_call.1} parent=1 // pred_fallthru
      _
    // Predicated region
    $region14: #{tpu_custom_call.1} parent=1 // pred_check
      _
    $region15: #{tpu_custom_call.1} parent=1 // pred_check_branch
      %38 = sbr.rel (0) target = $region17
    $region16: #{tpu_custom_call.1} parent=1 // pred_region
      _
    $region17: #{tpu_custom_call.1} parent=1 // pred_fallthru
      _
    // Predicated region
    $region18: #{tpu_custom_call.1} parent=1 // pred_check
      _
    $region19: #{tpu_custom_call.1} parent=1 // pred_check_branch
      %40 = sbr.rel (0) target = $region21
    $region20: #{tpu_custom_call.1} parent=1 // pred_region
      _
    $region21: #{tpu_custom_call.1} parent=1 // pred_fallthru
      _
    // Predicated region
    $region22: #{tpu_custom_call.1} parent=1 // pred_check
      _
    $region23: #{tpu_custom_call.1} parent=1 // pred_check_branch
      %42 = sbr.rel (0) target = $region25
    $region24: #{tpu_custom_call.1} parent=1 // pred_region
      %43 = dma.done [#allocation4], 128
    $region25: #{tpu_custom_call.1} parent=1 // pred_fallthru
      _
    // Predicated region
    $region26: #{tpu_custom_call.1} parent=1 // pred_check
      _
    $region27: #{tpu_custom_call.1} parent=1 // pred_check_branch
      %45 = sbr.rel (0) target = $region29
    $region28: #{tpu_custom_call.1} parent=1 // pred_region
      %46 = dma.done [#allocation6], 2048
    $region29: #{tpu_custom_call.1} parent=1 // pred_fallthru
      _
    %v47 = vld [vmem:[#allocation3] sm:$0xff]
    %v48 = vld [vmem:[#allocation5] sm:$0xff]
    %v49 = vld [vmem:[#allocation5 + $0x8] sm:$0xff]
    %v50 = vld [vmem:[#allocation5 + $0x10] sm:$0xff]
    %v51 = vld [vmem:[#allocation5 + $0x18] sm:$0xff]
    %v52 = vld [vmem:[#allocation5 + $0x20] sm:$0xff]
    %v53 = vld [vmem:[#allocation5 + $0x28] sm:$0xff]
    %v54 = vld [vmem:[#allocation5 + $0x30] sm:$0xff]
    %v55 = vld [vmem:[#allocation5 + $0x38] sm:$0xff]
    %v56 = vld [vmem:[#allocation5 + $0x40] sm:$0xff]
    %v57 = vld [vmem:[#allocation5 + $0x48] sm:$0xff]
    %v58 = vld [vmem:[#allocation5 + $0x50] sm:$0xff]
    %v59 = vld [vmem:[#allocation5 + $0x58] sm:$0xff]
    %v60 = vld [vmem:[#allocation5 + $0x60] sm:$0xff]
    %v61 = vld [vmem:[#allocation5 + $0x68] sm:$0xff]
    %v62 = vld [vmem:[#allocation5 + $0x70] sm:$0xff]
    %v63 = vld [vmem:[#allocation5 + $0x78] sm:$0xff]
    %v64 = vld [vmem:[%s2] sm:$0x1]
    %v66 = vlaneseq
    %v67 = vshrl.u32 %v66, 7
    %v68 = vsub.s32 0, %v67
    %v69 = vrot.slane %v64, %v68
    %71 = vmatprep.subr.mxu0 0.0
    %72 = vmatpush1.msra.mxu0 %v63
    %73 = vmatprep.subr.mxu0 0.0
    %74 = vmatpush1.msra.mxu0 %v62
    %75 = vmatprep.subr.mxu0 0.0
    %76 = vmatpush1.msra.mxu0 %v61
    %77 = vmatprep.subr.mxu0 0.0
    %78 = vmatpush1.msra.mxu0 %v60
    %79 = vmatprep.subr.mxu0 0.0
    %80 = vmatpush1.msra.mxu0 %v59
    %81 = vmatprep.subr.mxu0 0.0
    %82 = vmatpush1.msra.mxu0 %v58
    %83 = vmatprep.subr.mxu0 0.0
    %84 = vmatpush1.msra.mxu0 %v57
    %85 = vmatprep.subr.mxu0 0.0
    %86 = vmatpush1.msra.mxu0 %v56
    %87 = vmatprep.subr.mxu0 0.0
    %88 = vmatpush1.msra.mxu0 %v55
    %89 = vmatprep.subr.mxu0 0.0
    %90 = vmatpush1.msra.mxu0 %v54
    %91 = vmatprep.subr.mxu0 0.0
    %92 = vmatpush1.msra.mxu0 %v53
    %93 = vmatprep.subr.mxu0 0.0
    %94 = vmatpush1.msra.mxu0 %v52
    %95 = vmatprep.subr.mxu0 0.0
    %96 = vmatpush1.msra.mxu0 %v51
    %97 = vmatprep.subr.mxu0 0.0
    %98 = vmatpush1.msra.mxu0 %v50
    %99 = vmatprep.subr.mxu0 0.0
    %100 = vmatpush1.msra.mxu0 %v49
    %101 = vmatprep.subr.mxu0 0.0
    %102 = vmatpush1.msra.mxu0 %v48
    %103 = vmatprep.subr.mxu0 0.0
    %104 = vmatpush2.msra.mxu0 0.0
    %105 = vmatprep.subr.mxu0 0.0
    %106 = vmatpush2.msra.mxu0 0.0
    %107 = vmatprep.subr.mxu0 0.0
    %108 = vmatpush2.msra.mxu0 0.0
    %109 = vmatprep.subr.mxu0 0.0
    %110 = vmatpush2.msra.mxu0 0.0
    %111 = vmatprep.subr.mxu0 0.0
    %112 = vmatpush2.msra.mxu0 0.0
    %113 = vmatprep.subr.mxu0 0.0
    %114 = vmatpush2.msra.mxu0 0.0
    %115 = vmatprep.subr.mxu0 0.0
    %116 = vmatpush2.msra.mxu0 0.0
    %117 = vmatprep.subr.mxu0 0.0
    %118 = vmatpush2.msra.mxu0 0.0
    %119 = vmatprep.subr.mxu0 0.0
    %120 = vmatpush2.msra.mxu0 0.0
    %121 = vmatprep.subr.mxu0 0.0
    %122 = vmatpush2.msra.mxu0 0.0
    %123 = vmatprep.subr.mxu0 0.0
    %124 = vmatpush2.msra.mxu0 0.0
    %125 = vmatprep.subr.mxu0 0.0
    %126 = vmatpush2.msra.mxu0 0.0
    %127 = vmatprep.subr.mxu0 0.0
    %128 = vmatpush2.msra.mxu0 0.0
    %129 = vmatprep.subr.mxu0 0.0
    %130 = vmatpush2.msra.mxu0 0.0
    %131 = vmatprep.subr.mxu0 0.0
    %132 = vmatpush2.msra.mxu0 0.0
    %133 = vmatprep.subr.mxu0 0.0
    %134 = vmatpush2.msra.mxu0 0.0
    %135 = vmatprep.mubr.f32.mxu0 0.0
    %136 = vmatmul.mubr.f32.gmra.mxu0 %v47
    %v137 = vpop.f32.mrf.mxu0
    %v138 = vadd.f32 %v69, %v137
    %v139 = vpop.f32.mrf.mxu0
    %140 = vdwg.mxu0
    %v141 = vmax.f32 %v138, 0.0
    %v142 = vld [vmem:[%s3] sm:$0x1]
    %v144 = vlaneseq
    %v145 = vshrl.u32 %v144, 7
    %v146 = vsub.s32 0, %v145
    %v147 = vrot.slane %v142, %v146
    %v149 = vmul.f32 %v141, %v147
    %150 = vadd.xlane.f32.xlu0 %v149
    %v151 = vpop.xlane.xlu0 %150
    %s152 = sld [smem:[#allocation2]]
    %v153 = vstv %s152
    %v154 = vadd.f32 %v151, %v153
    %vm155 = vcmask 7168
    %156 = vst.msk [vmem:[%s5] sm:$0xff] %vm155, %v154
    // Predicated region
    $region30: #{tpu_custom_call.1} parent=1 // pred_check
      _
    $region31: #{tpu_custom_call.1} parent=1 // pred_check_branch
      %158 = sbr.rel (0) target = $region33
    $region32: #{tpu_custom_call.1} parent=1 // pred_region
      _
    $region33: #{tpu_custom_call.1} parent=1 // pred_fallthru
      _
    // Predicated region
    $region34: #{tpu_custom_call.1} parent=1 // pred_check
      _
    $region35: #{tpu_custom_call.1} parent=1 // pred_check_branch
      %160 = sbr.rel (0) target = $region37
    $region36: #{tpu_custom_call.1} parent=1 // pred_region
      _
    $region37: #{tpu_custom_call.1} parent=1 // pred_fallthru
      _
    %161 = vsyncpa [#allocation4], 1
    %162 = vsyncpa [#allocation6], 1

</llo_original>
